<compile_context>
chip_gen: v7x
topology: tpu7x:2x2x1
jax: 0.10.0
libtpu: 0.0.40
codegen_flags: <defaults>
</compile_context>

<pallas_src>
import functools

import jax
import jax.numpy as jnp
from jax.experimental import pallas as pl
from jax.experimental.pallas import tpu as pltpu

_LANES = 128
_SUBLANES = 8
_TILE_ROWS = 2048        # rows of 128 lanes per grid step (1 MiB f32 / input)


def _round_up(x, m):
    return (x + m - 1) // m * m


def _cdiv(a, b):
    return -(-a // b)


def _fold_rows(v):
    """(R, 128) f32 -> (8, 128) partial sum; pure VPU adds (R % 8 == 0)."""
    r, l = v.shape
    return jnp.sum(v.reshape(r // _SUBLANES, _SUBLANES, l), axis=0)


def _tc_split():
    """(n_cores, leading-axis dimension semantics) for this chip generation."""
    try:
        kind = jax.devices()[0].device_kind.lower()
    except Exception:
        return 1, "parallel"
    if "v7" in kind:
        # 2 TensorCores/chip; CORE_PARALLEL forces a genuine per-core shard.
        return 2, getattr(pltpu, "CORE_PARALLEL", "parallel")
    if ("v4" in kind) or ("v5p" in kind):
        return 2, "parallel"           # megacore split via plain parallel
    return 1, "parallel"               # single-TC v2/v3/v5e/v6e


def _gan_disc_loss_kernel(x_ref, y_ref, sreal_ref, sfake_ref, creal_ref,
                          cfake_ref, *, rows, tiles_per_core, tile_rows):
    """Accumulate per-core (8,128) partials of the four masked reductions.

    Output blocks (resident across the inner 'arbitrary' axis):
      sreal_ref : sum of log(x)     where y == 1
      sfake_ref : sum of log(1 - x) where y == 0
      creal_ref : count             where y == 1
      cfake_ref : count             where y == 0
    """
    c = pl.program_id(0)
    i = pl.program_id(1)

    @pl.when(i == 0)
    def _init():
        sreal_ref[...] = jnp.zeros_like(sreal_ref)
        sfake_ref[...] = jnp.zeros_like(sfake_ref)
        creal_ref[...] = jnp.zeros_like(creal_ref)
        cfake_ref[...] = jnp.zeros_like(cfake_ref)

    base_row = (c * tiles_per_core + i) * tile_rows

    def _accumulate(mask_rows):
        x = x_ref[...].astype(jnp.float32)
        y = y_ref[...]
        if y.dtype == jnp.bool_:
            real = y
            fake = jnp.logical_not(y)
        else:
            real = y == 1
            fake = y == 0

        # One transcendental per element; jnp.where is a select, so lanes of
        # the non-selected class (or garbage tail rows) never pollute the sums.
        z = jnp.where(real, x, 1.0 - x)
        log_z = jnp.log(z)

        if mask_rows:
            row_ids = jax.lax.broadcasted_iota(jnp.int32, x.shape, 0)
            valid = (base_row + row_ids) < rows
            real = jnp.logical_and(real, valid)
            fake = jnp.logical_and(fake, valid)

        sreal_ref[0] += _fold_rows(jnp.where(real, log_z, 0.0))
        sfake_ref[0] += _fold_rows(jnp.where(fake, log_z, 0.0))
        creal_ref[0] += _fold_rows(real.astype(jnp.float32))
        cfake_ref[0] += _fold_rows(fake.astype(jnp.float32))

    # Hot path: tile lies entirely inside the valid row range -> no mask work.
    @pl.when(base_row + tile_rows <= rows)
    def _full_tile():
        _accumulate(mask_rows=False)

    # Ragged tail tile: row-granular validity mask.
    @pl.when(jnp.logical_and(base_row < rows, base_row + tile_rows > rows))
    def _tail_tile():
        _accumulate(mask_rows=True)

    # Phantom steps (base_row >= rows, clamped onto a real block by the
    # index_map) fall through with no compute at all.


def gan_discriminator_loss(output, y_true):
    """Pallas implementation of GANDiscriminatorLoss.forward.

    output : probabilities in (0, 1), any shape (e.g. NCHW discriminator map)
    y_true : labels (0 = fake, 1 = real), same shape; float / int8 / bool.
             int8 or bool labels are recommended (they cut label HBM traffic
             ~4x vs float32 without any wrapper cast pass).
    returns: scalar float32 loss
    """
    x = output.reshape(-1)
    y = y_true.reshape(-1)
    n = x.shape[0]
    rows = n // _LANES
    n_aligned = rows * _LANES
    rem = n - n_aligned

    s_real = jnp.float32(0.0)
    s_fake = jnp.float32(0.0)
    c_real = jnp.float32(0.0)
    c_fake = jnp.float32(0.0)

    if rows > 0:
        # Lane-aligned prefix. When n is already a multiple of 128 (the common
        # case for NCHW maps) this is a free reshape of the original
        # contiguous buffer - no pad, no cast, no extra HBM pass.
        if rem:
            x2 = jax.lax.slice(x, (0,), (n_aligned,)).reshape(rows, _LANES)
            y2 = jax.lax.slice(y, (0,), (n_aligned,)).reshape(rows, _LANES)
        else:
            x2 = x.reshape(rows, _LANES)
            y2 = y.reshape(rows, _LANES)

        n_cores, core_sem = _tc_split()
        # Big tiles for large maps, one snug (sublane/int8-tile aligned) tile
        # for small inputs.
        tile_rows = min(_TILE_ROWS, _round_up(rows, 32))
        total_tiles = _cdiv(rows, tile_rows)
        if total_tiles < 2:
            n_cores = 1            # nothing to split; avoid phantom tile work
            core_sem = "parallel"
        tiles_per_core = _cdiv(total_tiles, n_cores)

        def in_idx(c, i):
            # Clamp phantom steps (odd tile counts) onto a real block; their
            # compute is skipped in-kernel via pl.when.
            t = jnp.minimum(c * tiles_per_core + i, total_tiles - 1)
            return (t, 0)

        in_spec = pl.BlockSpec((tile_rows, _LANES), in_idx)
        out_spec = pl.BlockSpec((1, _SUBLANES, _LANES), lambda c, i: (c, 0, 0))
        out_sds = jax.ShapeDtypeStruct((n_cores, _SUBLANES, _LANES),
                                       jnp.float32)

        if isinstance(core_sem, str):
            dim_sem = (core_sem, "arbitrary")
        else:
            dim_sem = (core_sem, getattr(pltpu, "ARBITRARY", "arbitrary"))

        kernel = functools.partial(_gan_disc_loss_kernel, rows=rows,
                                   tiles_per_core=tiles_per_core,
                                   tile_rows=tile_rows)

        sr, sf, cr, cf = pl.pallas_call(
            kernel,
            out_shape=(out_sds,) * 4,
            grid=(n_cores, tiles_per_core),
            in_specs=[in_spec, in_spec],
            out_specs=(out_spec,) * 4,
            compiler_params=pltpu.CompilerParams(
                dimension_semantics=dim_sem),
        )(x2, y2)

        # Tiny epilogue: collapse the per-core (8,128) partial slabs.
        s_real = jnp.sum(sr)
        s_fake = jnp.sum(sf)
        c_real = jnp.sum(cr)
        c_fake = jnp.sum(cf)

    if rem:
        # Ragged tail (< 128 elements): folded into the scalar epilogue
        # instead of padding both full arrays in HBM.
        xt = jax.lax.slice(x, (n_aligned,), (n,)).astype(jnp.float32)
        yt = jax.lax.slice(y, (n_aligned,), (n,))
        real_t = yt == 1
        fake_t = yt == 0
        s_real = s_real + jnp.sum(jnp.where(real_t, jnp.log(xt), 0.0))
        s_fake = s_fake + jnp.sum(jnp.where(fake_t, jnp.log(1.0 - xt), 0.0))
        c_real = c_real + jnp.sum(real_t.astype(jnp.float32))
        c_fake = c_fake + jnp.sum(fake_t.astype(jnp.float32))

    # If a class is absent the result is inf/nan, matching torch.mean([]).
    return -(s_real / c_real) - (s_fake / c_fake)


def _reference_loss(output, y_true):
    """Pure-JAX reference (masked-mean formulation, identical math)."""
    x = output.reshape(-1).astype(jnp.float32)
    y = y_true.reshape(-1).astype(jnp.float32)
    real = y == 1.0
    fake = y == 0.0
    loss_real = -jnp.sum(jnp.where(real, jnp.log(x), 0.0)) / jnp.sum(real)
    loss_fake = -jnp.sum(jnp.where(fake, jnp.log(1.0 - x), 0.0)) / jnp.sum(fake)
    return loss_real + loss_fake


if __name__ == "__main__":
    key = jax.random.PRNGKey(0)
    k1, k2, k3, k4, k5, k6 = jax.random.split(key, 6)

    # Case 1: lane-aligned NCHW discriminator map, float32 labels
    # (zero-copy path: no pad, no cast, free reshape into the kernel).
    shape = (2, 4, 16, 16)
    output = jax.nn.sigmoid(jax.random.normal(k1, shape, dtype=jnp.float32))
    y_true = jax.random.bernoulli(k2, p=0.5, shape=shape).astype(jnp.float32)

    loss = jax.block_until_ready(gan_discriminator_loss(output, y_true))
    ref = jax.block_until_ready(_reference_loss(output, y_true))
    assert jnp.isfinite(loss), f"non-finite loss: {loss}"
    assert jnp.allclose(loss, ref, rtol=1e-5, atol=1e-5), (loss, ref)

    # Case 2: ragged element count (exercises the in-kernel tail-tile mask and
    # the <128-element JAX epilogue tail; no full-array pad anywhere).
    shape2 = (3, 3, 20, 20)
    output2 = jax.nn.sigmoid(jax.random.normal(k3, shape2, dtype=jnp.float32))
    y_true2 = jax.random.bernoulli(k4, p=0.5, shape=shape2).astype(jnp.float32)

    loss2 = jax.block_until_ready(gan_discriminator_loss(output2, y_true2))
    ref2 = jax.block_until_ready(_reference_loss(output2, y_true2))
    assert jnp.isfinite(loss2), f"non-finite loss: {loss2}"
    assert jnp.allclose(loss2, ref2, rtol=1e-5, atol=1e-5), (loss2, ref2)

    # Case 3: int8 labels (recommended low-traffic label dtype) and a row
    # count that exercises the unmasked full-tile hot path.
    shape3 = (2, 4, 32, 16)
    output3 = jax.nn.sigmoid(jax.random.normal(k5, shape3, dtype=jnp.float32))
    y_true3 = jax.random.bernoulli(k6, p=0.5, shape=shape3).astype(jnp.int8)

    loss3 = jax.block_until_ready(gan_discriminator_loss(output3, y_true3))
    ref3 = jax.block_until_ready(_reference_loss(output3, y_true3))
    assert jnp.isfinite(loss3), f"non-finite loss: {loss3}"
    assert jnp.allclose(loss3, ref3, rtol=1e-5, atol=1e-5), (loss3, ref3)

    print("KERNEL_OK")
</pallas_src>

<mosaic_0001>
module attributes {stable_mosaic.version = 11 : i64} {
  func.func @_gan_disc_loss_kernel(%arg0: i32, %arg1: i32, %arg2: memref<32x128xf32, #tpu.memory_space<vmem>>, %arg3: memref<32x128xf32, #tpu.memory_space<vmem>>, %arg4: memref<1x8x128xf32, #tpu.memory_space<vmem>>, %arg5: memref<1x8x128xf32, #tpu.memory_space<vmem>>, %arg6: memref<1x8x128xf32, #tpu.memory_space<vmem>>, %arg7: memref<1x8x128xf32, #tpu.memory_space<vmem>>) attributes {dimension_semantics = [#tpu.dimension_semantics<parallel>, #tpu.dimension_semantics<arbitrary>], iteration_bounds = array<i64: 1, 1>, scalar_prefetch = 0 : i64, scratch_operands = 0 : i64, tpu.core_type = #tpu.core_type<tc>, window_params = [{transform_indices = @transform_0, window_bounds = array<i64: 32, 128>}, {transform_indices = @transform_1, window_bounds = array<i64: 32, 128>}, {transform_indices = @transform_2, window_bounds = array<i64: 1, 8, 128>}, {transform_indices = @transform_3, window_bounds = array<i64: 1, 8, 128>}, {transform_indices = @transform_4, window_bounds = array<i64: 1, 8, 128>}, {transform_indices = @transform_5, window_bounds = array<i64: 1, 8, 128>}]} {
    %c0_i32 = arith.constant 0 : i32
    %0 = arith.cmpi eq, %arg1, %c0_i32 : i32
    %1 = arith.extui %0 : i1 to i32
    %c0_i32_0 = arith.constant 0 : i32
    %2 = arith.cmpi ne, %1, %c0_i32_0 : i32
    scf.if %2 {
      %cst = arith.constant 0.000000e+00 : f32
      %16 = vector.broadcast %cst : f32 to vector<1x8x128xf32>
      %c0 = arith.constant 0 : index
      %c0_7 = arith.constant 0 : index
      %c0_8 = arith.constant 0 : index
      %17 = vector.load %arg4[%c0, %c0_7, %c0_8] : memref<1x8x128xf32, #tpu.memory_space<vmem>>, vector<1x8x128xf32>
      tpu.vector_store %arg4[%c0, %c0_7, %c0_8], %16 {strides = array<i32>} : memref<1x8x128xf32, #tpu.memory_space<vmem>>, vector<1x8x128xf32>,
      %cst_9 = arith.constant 0.000000e+00 : f32
      %18 = vector.broadcast %cst_9 : f32 to vector<1x8x128xf32>
      %c0_10 = arith.constant 0 : index
      %c0_11 = arith.constant 0 : index
      %c0_12 = arith.constant 0 : index
      %19 = vector.load %arg5[%c0_10, %c0_11, %c0_12] : memref<1x8x128xf32, #tpu.memory_space<vmem>>, vector<1x8x128xf32>
      tpu.vector_store %arg5[%c0_10, %c0_11, %c0_12], %18 {strides = array<i32>} : memref<1x8x128xf32, #tpu.memory_space<vmem>>, vector<1x8x128xf32>,
      %cst_13 = arith.constant 0.000000e+00 : f32
      %20 = vector.broadcast %cst_13 : f32 to vector<1x8x128xf32>
      %c0_14 = arith.constant 0 : index
      %c0_15 = arith.constant 0 : index
      %c0_16 = arith.constant 0 : index
      %21 = vector.load %arg6[%c0_14, %c0_15, %c0_16] : memref<1x8x128xf32, #tpu.memory_space<vmem>>, vector<1x8x128xf32>
      tpu.vector_store %arg6[%c0_14, %c0_15, %c0_16], %20 {strides = array<i32>} : memref<1x8x128xf32, #tpu.memory_space<vmem>>, vector<1x8x128xf32>,
      %cst_17 = arith.constant 0.000000e+00 : f32
      %22 = vector.broadcast %cst_17 : f32 to vector<1x8x128xf32>
      %c0_18 = arith.constant 0 : index
      %c0_19 = arith.constant 0 : index
      %c0_20 = arith.constant 0 : index
      %23 = vector.load %arg7[%c0_18, %c0_19, %c0_20] : memref<1x8x128xf32, #tpu.memory_space<vmem>>, vector<1x8x128xf32>
      tpu.vector_store %arg7[%c0_18, %c0_19, %c0_20], %22 {strides = array<i32>} : memref<1x8x128xf32, #tpu.memory_space<vmem>>, vector<1x8x128xf32>,
    } else {
    }
    %c1_i32 = arith.constant 1 : i32
    %3 = arith.muli %arg0, %c1_i32 : i32
    %4 = arith.addi %3, %arg1 : i32
    %c32_i32 = arith.constant 32 : i32
    %5 = arith.muli %4, %c32_i32 : i32
    %c32_i32_1 = arith.constant 32 : i32
    %6 = arith.addi %5, %c32_i32_1 : i32
    %c16_i32 = arith.constant 16 : i32
    %7 = arith.cmpi sle, %6, %c16_i32 : i32
    %8 = arith.extui %7 : i1 to i32
    %c0_i32_2 = arith.constant 0 : i32
    %9 = arith.cmpi ne, %8, %c0_i32_2 : i32
    scf.if %9 {
      %c0 = arith.constant 0 : index
      %c0_7 = arith.constant 0 : index
      %16 = vector.load %arg2[%c0, %c0_7] : memref<32x128xf32, #tpu.memory_space<vmem>>, vector<32x128xf32>
      %c0_8 = arith.constant 0 : index
      %c0_9 = arith.constant 0 : index
      %17 = vector.load %arg3[%c0_8, %c0_9] : memref<32x128xf32, #tpu.memory_space<vmem>>, vector<32x128xf32>
      %cst = arith.constant 1.000000e+00 : f32
      %18 = vector.broadcast %cst : f32 to vector<32x128xf32>
      %19 = arith.cmpf oeq, %17, %18 : vector<32x128xf32>
      %cst_10 = arith.constant 0.000000e+00 : f32
      %20 = vector.broadcast %cst_10 : f32 to vector<32x128xf32>
      %21 = arith.cmpf oeq, %17, %20 : vector<32x128xf32>
      %cst_11 = arith.constant 1.000000e+00 : f32
      %22 = vector.broadcast %cst_11 : f32 to vector<32x128xf32>
      %23 = arith.subf %22, %16 : vector<32x128xf32>
      %24 = arith.select %19, %16, %23 : vector<32x128xi1>, vector<32x128xf32>
      %25 = math.log %24 : vector<32x128xf32>
      %c0_12 = arith.constant 0 : index
      %c0_13 = arith.constant 0 : index
      %c0_14 = arith.constant 0 : index
      %26 = vector.load %arg4[%c0_12, %c0_13, %c0_14] : memref<1x8x128xf32, #tpu.memory_space<vmem>>, vector<1x8x128xf32>
      %27 = vector.shape_cast %26 : vector<1x8x128xf32> to vector<8x128xf32>
      %cst_15 = arith.constant 0.000000e+00 : f32
      %28 = vector.broadcast %cst_15 : f32 to vector<32x128xf32>
      %29 = arith.select %19, %25, %28 : vector<32x128xi1>, vector<32x128xf32>
      %30 = vector.shape_cast %29 : vector<32x128xf32> to vector<4x8x128xf32>
      %cst_16 = arith.constant dense<0.000000e+00> : vector<8x128xf32>
      %31 = vector.multi_reduction <add>, %30, %cst_16 [0] : vector<4x8x128xf32> to vector<8x128xf32>
      %32 = arith.addf %27, %31 : vector<8x128xf32>
      %c0_17 = arith.constant 0 : index
      %c0_18 = arith.constant 0 : index
      %c0_19 = arith.constant 0 : index
      %33 = vector.load %arg4[%c0_17, %c0_18, %c0_19] : memref<1x8x128xf32, #tpu.memory_space<vmem>>, vector<1x8x128xf32>
      %34 = vector.shape_cast %33 : vector<1x8x128xf32> to vector<8x128xf32>
      %35 = vector.shape_cast %32 : vector<8x128xf32> to vector<1x8x128xf32>
      tpu.vector_store %arg4[%c0_17, %c0_18, %c0_19], %35 {strides = array<i32>} : memref<1x8x128xf32, #tpu.memory_space<vmem>>, vector<1x8x128xf32>,
      %c0_20 = arith.constant 0 : index
      %c0_21 = arith.constant 0 : index
      %c0_22 = arith.constant 0 : index
      %36 = vector.load %arg5[%c0_20, %c0_21, %c0_22] : memref<1x8x128xf32, #tpu.memory_space<vmem>>, vector<1x8x128xf32>
      %37 = vector.shape_cast %36 : vector<1x8x128xf32> to vector<8x128xf32>
      %cst_23 = arith.constant 0.000000e+00 : f32
      %38 = vector.broadcast %cst_23 : f32 to vector<32x128xf32>
      %39 = arith.select %21, %25, %38 : vector<32x128xi1>, vector<32x128xf32>
      %40 = vector.shape_cast %39 : vector<32x128xf32> to vector<4x8x128xf32>
      %cst_24 = arith.constant dense<0.000000e+00> : vector<8x128xf32>
      %41 = vector.multi_reduction <add>, %40, %cst_24 [0] : vector<4x8x128xf32> to vector<8x128xf32>
      %42 = arith.addf %37, %41 : vector<8x128xf32>
      %c0_25 = arith.constant 0 : index
      %c0_26 = arith.constant 0 : index
      %c0_27 = arith.constant 0 : index
      %43 = vector.load %arg5[%c0_25, %c0_26, %c0_27] : memref<1x8x128xf32, #tpu.memory_space<vmem>>, vector<1x8x128xf32>
      %44 = vector.shape_cast %43 : vector<1x8x128xf32> to vector<8x128xf32>
      %45 = vector.shape_cast %42 : vector<8x128xf32> to vector<1x8x128xf32>
      tpu.vector_store %arg5[%c0_25, %c0_26, %c0_27], %45 {strides = array<i32>} : memref<1x8x128xf32, #tpu.memory_space<vmem>>, vector<1x8x128xf32>,
      %c0_28 = arith.constant 0 : index
      %c0_29 = arith.constant 0 : index
      %c0_30 = arith.constant 0 : index
      %46 = vector.load %arg6[%c0_28, %c0_29, %c0_30] : memref<1x8x128xf32, #tpu.memory_space<vmem>>, vector<1x8x128xf32>
      %47 = vector.shape_cast %46 : vector<1x8x128xf32> to vector<8x128xf32>
      %48 = arith.extui %19 : vector<32x128xi1> to vector<32x128xi32>
      %49 = arith.sitofp %48 : vector<32x128xi32> to vector<32x128xf32>
      %50 = vector.shape_cast %49 : vector<32x128xf32> to vector<4x8x128xf32>
      %cst_31 = arith.constant dense<0.000000e+00> : vector<8x128xf32>
      %51 = vector.multi_reduction <add>, %50, %cst_31 [0] : vector<4x8x128xf32> to vector<8x128xf32>
      %52 = arith.addf %47, %51 : vector<8x128xf32>
      %c0_32 = arith.constant 0 : index
      %c0_33 = arith.constant 0 : index
      %c0_34 = arith.constant 0 : index
      %53 = vector.load %arg6[%c0_32, %c0_33, %c0_34] : memref<1x8x128xf32, #tpu.memory_space<vmem>>, vector<1x8x128xf32>
      %54 = vector.shape_cast %53 : vector<1x8x128xf32> to vector<8x128xf32>
      %55 = vector.shape_cast %52 : vector<8x128xf32> to vector<1x8x128xf32>
      tpu.vector_store %arg6[%c0_32, %c0_33, %c0_34], %55 {strides = array<i32>} : memref<1x8x128xf32, #tpu.memory_space<vmem>>, vector<1x8x128xf32>,
      %c0_35 = arith.constant 0 : index
      %c0_36 = arith.constant 0 : index
      %c0_37 = arith.constant 0 : index
      %56 = vector.load %arg7[%c0_35, %c0_36, %c0_37] : memref<1x8x128xf32, #tpu.memory_space<vmem>>, vector<1x8x128xf32>
      %57 = vector.shape_cast %56 : vector<1x8x128xf32> to vector<8x128xf32>
      %58 = arith.extui %21 : vector<32x128xi1> to vector<32x128xi32>
      %59 = arith.sitofp %58 : vector<32x128xi32> to vector<32x128xf32>
      %60 = vector.shape_cast %59 : vector<32x128xf32> to vector<4x8x128xf32>
      %cst_38 = arith.constant dense<0.000000e+00> : vector<8x128xf32>
      %61 = vector.multi_reduction <add>, %60, %cst_38 [0] : vector<4x8x128xf32> to vector<8x128xf32>
      %62 = arith.addf %57, %61 : vector<8x128xf32>
      %c0_39 = arith.constant 0 : index
      %c0_40 = arith.constant 0 : index
      %c0_41 = arith.constant 0 : index
      %63 = vector.load %arg7[%c0_39, %c0_40, %c0_41] : memref<1x8x128xf32, #tpu.memory_space<vmem>>, vector<1x8x128xf32>
      %64 = vector.shape_cast %63 : vector<1x8x128xf32> to vector<8x128xf32>
      %65 = vector.shape_cast %62 : vector<8x128xf32> to vector<1x8x128xf32>
      tpu.vector_store %arg7[%c0_39, %c0_40, %c0_41], %65 {strides = array<i32>} : memref<1x8x128xf32, #tpu.memory_space<vmem>>, vector<1x8x128xf32>,
    } else {
    }
    %c16_i32_3 = arith.constant 16 : i32
    %10 = arith.cmpi slt, %5, %c16_i32_3 : i32
    %c32_i32_4 = arith.constant 32 : i32
    %11 = arith.addi %5, %c32_i32_4 : i32
    %c16_i32_5 = arith.constant 16 : i32
    %12 = arith.cmpi sgt, %11, %c16_i32_5 : i32
    %13 = arith.andi %10, %12 : i1
    %14 = arith.extui %13 : i1 to i32
    %c0_i32_6 = arith.constant 0 : i32
    %15 = arith.cmpi ne, %14, %c0_i32_6 : i32
    scf.if %15 {
      %c0 = arith.constant 0 : index
      %c0_7 = arith.constant 0 : index
      %16 = vector.load %arg2[%c0, %c0_7] : memref<32x128xf32, #tpu.memory_space<vmem>>, vector<32x128xf32>
      %c0_8 = arith.constant 0 : index
      %c0_9 = arith.constant 0 : index
      %17 = vector.load %arg3[%c0_8, %c0_9] : memref<32x128xf32, #tpu.memory_space<vmem>>, vector<32x128xf32>
      %cst = arith.constant 1.000000e+00 : f32
      %18 = vector.broadcast %cst : f32 to vector<32x128xf32>
      %19 = arith.cmpf oeq, %17, %18 : vector<32x128xf32>
      %cst_10 = arith.constant 0.000000e+00 : f32
      %20 = vector.broadcast %cst_10 : f32 to vector<32x128xf32>
      %21 = arith.cmpf oeq, %17, %20 : vector<32x128xf32>
      %cst_11 = arith.constant 1.000000e+00 : f32
      %22 = vector.broadcast %cst_11 : f32 to vector<32x128xf32>
      %23 = arith.subf %22, %16 : vector<32x128xf32>
      %24 = arith.select %19, %16, %23 : vector<32x128xi1>, vector<32x128xf32>
      %25 = math.log %24 : vector<32x128xf32>
      %26 = tpu.iota {dimensions = array<i32: 0>} : vector<32x128xi32>
      %27 = vector.broadcast %5 : i32 to vector<32x128xi32>
      %28 = arith.addi %27, %26 : vector<32x128xi32>
      %c16_i32_12 = arith.constant 16 : i32
      %29 = vector.broadcast %c16_i32_12 : i32 to vector<32x128xi32>
      %30 = arith.cmpi slt, %28, %29 : vector<32x128xi32>
      %31 = arith.andi %19, %30 : vector<32x128xi1>
      %32 = arith.andi %21, %30 : vector<32x128xi1>
      %c0_13 = arith.constant 0 : index
      %c0_14 = arith.constant 0 : index
      %c0_15 = arith.constant 0 : index
      %33 = vector.load %arg4[%c0_13, %c0_14, %c0_15] : memref<1x8x128xf32, #tpu.memory_space<vmem>>, vector<1x8x128xf32>
      %34 = vector.shape_cast %33 : vector<1x8x128xf32> to vector<8x128xf32>
      %cst_16 = arith.constant 0.000000e+00 : f32
      %35 = vector.broadcast %cst_16 : f32 to vector<32x128xf32>
      %36 = arith.select %31, %25, %35 : vector<32x128xi1>, vector<32x128xf32>
      %37 = vector.shape_cast %36 : vector<32x128xf32> to vector<4x8x128xf32>
      %cst_17 = arith.constant dense<0.000000e+00> : vector<8x128xf32>
      %38 = vector.multi_reduction <add>, %37, %cst_17 [0] : vector<4x8x128xf32> to vector<8x128xf32>
      %39 = arith.addf %34, %38 : vector<8x128xf32>
      %c0_18 = arith.constant 0 : index
      %c0_19 = arith.constant 0 : index
      %c0_20 = arith.constant 0 : index
      %40 = vector.load %arg4[%c0_18, %c0_19, %c0_20] : memref<1x8x128xf32, #tpu.memory_space<vmem>>, vector<1x8x128xf32>
      %41 = vector.shape_cast %40 : vector<1x8x128xf32> to vector<8x128xf32>
      %42 = vector.shape_cast %39 : vector<8x128xf32> to vector<1x8x128xf32>
      tpu.vector_store %arg4[%c0_18, %c0_19, %c0_20], %42 {strides = array<i32>} : memref<1x8x128xf32, #tpu.memory_space<vmem>>, vector<1x8x128xf32>,
      %c0_21 = arith.constant 0 : index
      %c0_22 = arith.constant 0 : index
      %c0_23 = arith.constant 0 : index
      %43 = vector.load %arg5[%c0_21, %c0_22, %c0_23] : memref<1x8x128xf32, #tpu.memory_space<vmem>>, vector<1x8x128xf32>
      %44 = vector.shape_cast %43 : vector<1x8x128xf32> to vector<8x128xf32>
      %cst_24 = arith.constant 0.000000e+00 : f32
      %45 = vector.broadcast %cst_24 : f32 to vector<32x128xf32>
      %46 = arith.select %32, %25, %45 : vector<32x128xi1>, vector<32x128xf32>
      %47 = vector.shape_cast %46 : vector<32x128xf32> to vector<4x8x128xf32>
      %cst_25 = arith.constant dense<0.000000e+00> : vector<8x128xf32>
      %48 = vector.multi_reduction <add>, %47, %cst_25 [0] : vector<4x8x128xf32> to vector<8x128xf32>
      %49 = arith.addf %44, %48 : vector<8x128xf32>
      %c0_26 = arith.constant 0 : index
      %c0_27 = arith.constant 0 : index
      %c0_28 = arith.constant 0 : index
      %50 = vector.load %arg5[%c0_26, %c0_27, %c0_28] : memref<1x8x128xf32, #tpu.memory_space<vmem>>, vector<1x8x128xf32>
      %51 = vector.shape_cast %50 : vector<1x8x128xf32> to vector<8x128xf32>
      %52 = vector.shape_cast %49 : vector<8x128xf32> to vector<1x8x128xf32>
      tpu.vector_store %arg5[%c0_26, %c0_27, %c0_28], %52 {strides = array<i32>} : memref<1x8x128xf32, #tpu.memory_space<vmem>>, vector<1x8x128xf32>,
      %c0_29 = arith.constant 0 : index
      %c0_30 = arith.constant 0 : index
      %c0_31 = arith.constant 0 : index
      %53 = vector.load %arg6[%c0_29, %c0_30, %c0_31] : memref<1x8x128xf32, #tpu.memory_space<vmem>>, vector<1x8x128xf32>
      %54 = vector.shape_cast %53 : vector<1x8x128xf32> to vector<8x128xf32>
      %55 = arith.extui %31 : vector<32x128xi1> to vector<32x128xi32>
      %56 = arith.sitofp %55 : vector<32x128xi32> to vector<32x128xf32>
      %57 = vector.shape_cast %56 : vector<32x128xf32> to vector<4x8x128xf32>
      %cst_32 = arith.constant dense<0.000000e+00> : vector<8x128xf32>
      %58 = vector.multi_reduction <add>, %57, %cst_32 [0] : vector<4x8x128xf32> to vector<8x128xf32>
      %59 = arith.addf %54, %58 : vector<8x128xf32>
      %c0_33 = arith.constant 0 : index
      %c0_34 = arith.constant 0 : index
      %c0_35 = arith.constant 0 : index
      %60 = vector.load %arg6[%c0_33, %c0_34, %c0_35] : memref<1x8x128xf32, #tpu.memory_space<vmem>>, vector<1x8x128xf32>
      %61 = vector.shape_cast %60 : vector<1x8x128xf32> to vector<8x128xf32>
      %62 = vector.shape_cast %59 : vector<8x128xf32> to vector<1x8x128xf32>
      tpu.vector_store %arg6[%c0_33, %c0_34, %c0_35], %62 {strides = array<i32>} : memref<1x8x128xf32, #tpu.memory_space<vmem>>, vector<1x8x128xf32>,
      %c0_36 = arith.constant 0 : index
      %c0_37 = arith.constant 0 : index
      %c0_38 = arith.constant 0 : index
      %63 = vector.load %arg7[%c0_36, %c0_37, %c0_38] : memref<1x8x128xf32, #tpu.memory_space<vmem>>, vector<1x8x128xf32>
      %64 = vector.shape_cast %63 : vector<1x8x128xf32> to vector<8x128xf32>
      %65 = arith.extui %32 : vector<32x128xi1> to vector<32x128xi32>
      %66 = arith.sitofp %65 : vector<32x128xi32> to vector<32x128xf32>
      %67 = vector.shape_cast %66 : vector<32x128xf32> to vector<4x8x128xf32>
      %cst_39 = arith.constant dense<0.000000e+00> : vector<8x128xf32>
      %68 = vector.multi_reduction <add>, %67, %cst_39 [0] : vector<4x8x128xf32> to vector<8x128xf32>
      %69 = arith.addf %64, %68 : vector<8x128xf32>
      %c0_40 = arith.constant 0 : index
      %c0_41 = arith.constant 0 : index
      %c0_42 = arith.constant 0 : index
      %70 = vector.load %arg7[%c0_40, %c0_41, %c0_42] : memref<1x8x128xf32, #tpu.memory_space<vmem>>, vector<1x8x128xf32>
      %71 = vector.shape_cast %70 : vector<1x8x128xf32> to vector<8x128xf32>
      %72 = vector.shape_cast %69 : vector<8x128xf32> to vector<1x8x128xf32>
      tpu.vector_store %arg7[%c0_40, %c0_41, %c0_42], %72 {strides = array<i32>} : memref<1x8x128xf32, #tpu.memory_space<vmem>>, vector<1x8x128xf32>,
    } else {
    }
    return
  }
  func.func @transform_0(%arg0: i32, %arg1: i32) -> (i32, i32) {
    %c1_i32 = arith.constant 1 : i32
    %0 = arith.muli %arg0, %c1_i32 : i32
    %1 = arith.addi %0, %arg1 : i32
    %c0_i32 = arith.constant 0 : i32
    %2 = arith.minsi %1, %c0_i32 : i32
    %c0_i32_0 = arith.constant 0 : i32
    %c0_i32_1 = arith.constant 0 : i32
    return %2, %c0_i32_0 : i32, i32
  }
  func.func @transform_1(%arg0: i32, %arg1: i32) -> (i32, i32) {
    %c1_i32 = arith.constant 1 : i32
    %0 = arith.muli %arg0, %c1_i32 : i32
    %1 = arith.addi %0, %arg1 : i32
    %c0_i32 = arith.constant 0 : i32
    %2 = arith.minsi %1, %c0_i32 : i32
    %c0_i32_0 = arith.constant 0 : i32
    %c0_i32_1 = arith.constant 0 : i32
    return %2, %c0_i32_0 : i32, i32
  }
  func.func @transform_2(%arg0: i32, %arg1: i32) -> (i32, i32, i32) {
    %c0_i32 = arith.constant 0 : i32
    %c0_i32_0 = arith.constant 0 : i32
    %c0_i32_1 = arith.constant 0 : i32
    return %arg0, %c0_i32, %c0_i32_0 : i32, i32, i32
  }
  func.func @transform_3(%arg0: i32, %arg1: i32) -> (i32, i32, i32) {
    %c0_i32 = arith.constant 0 : i32
    %c0_i32_0 = arith.constant 0 : i32
    %c0_i32_1 = arith.constant 0 : i32
    return %arg0, %c0_i32, %c0_i32_0 : i32, i32, i32
  }
  func.func @transform_4(%arg0: i32, %arg1: i32) -> (i32, i32, i32) {
    %c0_i32 = arith.constant 0 : i32
    %c0_i32_0 = arith.constant 0 : i32
    %c0_i32_1 = arith.constant 0 : i32
    return %arg0, %c0_i32, %c0_i32_0 : i32, i32, i32
  }
  func.func @transform_5(%arg0: i32, %arg1: i32) -> (i32, i32, i32) {
    %c0_i32 = arith.constant 0 : i32
    %c0_i32_0 = arith.constant 0 : i32
    %c0_i32_1 = arith.constant 0 : i32
    return %arg0, %c0_i32, %c0_i32_0 : i32, i32, i32
  }
}

</mosaic_0001>

<llo_original>
// kernel: tpu_custom_call.1
$region0: #{tpu_custom_call.1}
  #allocation0 [shape = 'u32[]', space=smem, size = 0x4, offset = 0x4, fixed_abs, tag = 'smem constant byte address 0x4 - core index']
  #allocation1 [shape = 'u32[144,128]{1,0:T(1,128)}', space=vmem, size = 0x12000, scoped, tag = 'internal scratch']
  %s0 = inlined_call_operand.hbm [shape: f32[16,128], index: 0, kind: input, shape index: {}]
  %s1 = inlined_call_operand.hbm [shape: f32[16,128], index: 1, kind: input, shape index: {}]
  %s2 = inlined_call_operand.hbm [shape: f32[1,8,128], index: 2, kind: output, shape index: {0}]
  %s3 = inlined_call_operand.hbm [shape: f32[1,8,128], index: 3, kind: output, shape index: {1}]
  %s4 = inlined_call_operand.hbm [shape: f32[1,8,128], index: 4, kind: output, shape index: {2}]
  %s5 = inlined_call_operand.hbm [shape: f32[1,8,128], index: 5, kind: output, shape index: {3}]
  %6 = xla_tuple %s2, %s3, %s4, %s5
  %s7 = sld [smem:[#allocation0]]
  $region62: #{tpu_custom_call.1} parent=0
    _
  %s9 = ssub.s32 1, %s7
  %s10 = scalar_select 0, %s9, %s7
  $region1: #{tpu_custom_call.1} parent=0
    #allocation2 [shape = 'u8[16384]{0}', space=vmem, size = 0x4000, scoped, tag = 'input window, operand 0, single buffered']
    #allocation3 [shape = 's32[1]{0}', space=sflag, size = 0x4, scoped, tag = 'scoped memory for tpu_custom_call.1']
    #allocation4 [shape = 's32[1]{0}', space=sflag, size = 0x4, scoped, tag = 'scoped memory for tpu_custom_call.1']
    #allocation5 [shape = 'u8[16384]{0}', space=vmem, size = 0x4000, scoped, tag = 'input window, operand 1, single buffered']
    #allocation6 [shape = 's32[1]{0}', space=sflag, size = 0x4, scoped, tag = 'scoped memory for tpu_custom_call.1']
    #allocation7 [shape = 'u8[4096]{0}', space=vmem, size = 0x1000, scoped, tag = 'output window, operand 0, single buffered']
    #allocation8 [shape = 'u8[4096]{0}', space=vmem, size = 0x1000, scoped, tag = 'output window, operand 1, single buffered']
    #allocation9 [shape = 's32[1]{0}', space=sflag, size = 0x4, scoped, tag = 'scoped memory for tpu_custom_call.1']
    #allocation10 [shape = 'u8[4096]{0}', space=vmem, size = 0x1000, scoped, tag = 'output window, operand 2, single buffered']
    #allocation11 [shape = 'u8[4096]{0}', space=vmem, size = 0x1000, scoped, tag = 'output window, operand 3, single buffered']
    #allocation12 [shape = 's32[1]{0}', space=sflag, size = 0x4, scoped, tag = 'scoped memory for tpu_custom_call.1']
    %11 = vsyncpa [#allocation3], 0
    %12 = vsyncpa [#allocation6], 0
    %13 = vsyncpa [#allocation4], 0
    %14 = vsyncpa [#allocation9], 0
    %15 = vsyncpa [#allocation12], 0
    // Predicated region
    $region2: #{tpu_custom_call.1} parent=1 // pred_check
      _
    $region3: #{tpu_custom_call.1} parent=1 // pred_check_branch
      %17 = sbr.rel (0) target = $region5
    $region4: #{tpu_custom_call.1} parent=1 // pred_region
      %s18 = sadd.s32 0, 0
      %p19 = scmp.lt.s32.totalorder %s18, 0
      %s20 = scalar_select %p19, %s18, 0
      %s21 = smul.u32 4, %s20
      %s22 = ssub.s32 2, %s21
      %s23 = smul.u32 128, %s22
      %s25 = ssub.s32 512, %s23
      %26 = vsyncadd [#allocation3], %s25
      %p27 = scmp.ne.s32.totalorder 0, %s23
      %s28 = smul.addr %s21, 128
      %s29 = scalar_lea.hbm %s0, %s28
      %s30 = smul.u32 8, %s22
      %s31 = sshll.u32 [#allocation2], 4
      %s32 = int_to_ptr.vmem [resolvable:$true] %s31
      %s33 = sshll.u32 %s30, 4
      %37 = dma.hbm_to_vmem [thread:$0]  (%p27), %s29, %s33, %s32, [#allocation3], 128, 128, 8
    $region5: #{tpu_custom_call.1} parent=1 // pred_fallthru
      _
    // Predicated region
    $region6: #{tpu_custom_call.1} parent=1 // pred_check
      _
    $region7: #{tpu_custom_call.1} parent=1 // pred_check_branch
      %39 = sbr.rel (0) target = $region9
    $region8: #{tpu_custom_call.1} parent=1 // pred_region
      %s40 = sadd.s32 0, 0
      %p41 = scmp.lt.s32.totalorder %s40, 0
      %s42 = scalar_select %p41, %s40, 0
      %s43 = smul.u32 4, %s42
      %s44 = ssub.s32 2, %s43
      %s45 = smul.u32 128, %s44
      %s47 = ssub.s32 512, %s45
      %48 = vsyncadd [#allocation6], %s47
      %p49 = scmp.ne.s32.totalorder 0, %s45
      %s50 = smul.addr %s43, 128
      %s51 = scalar_lea.hbm %s1, %s50
      %s52 = smul.u32 8, %s44
      %s53 = sshll.u32 [#allocation5], 4
      %s54 = int_to_ptr.vmem [resolvable:$true] %s53
      %s55 = sshll.u32 %s52, 4
      %59 = dma.hbm_to_vmem [thread:$0]  (%p49), %s51, %s55, %s54, [#allocation6], 128, 128, 8
    $region9: #{tpu_custom_call.1} parent=1 // pred_fallthru
      _
    // Predicated region
    $region10: #{tpu_custom_call.1} parent=1 // pred_check
      _
    $region11: #{tpu_custom_call.1} parent=1 // pred_check_branch
      %61 = sbr.rel (0) target = $region13
    $region12: #{tpu_custom_call.1} parent=1 // pred_region
      %62 = dma.done [#allocation3], 512
    $region13: #{tpu_custom_call.1} parent=1 // pred_fallthru
      _
    // Predicated region
    $region14: #{tpu_custom_call.1} parent=1 // pred_check
      _
    $region15: #{tpu_custom_call.1} parent=1 // pred_check_branch
      %64 = sbr.rel (0) target = $region17
    $region16: #{tpu_custom_call.1} parent=1 // pred_region
      %65 = dma.done [#allocation6], 512
    $region17: #{tpu_custom_call.1} parent=1 // pred_fallthru
      _
    %s66 = sadd.s32 0, 0
    %p67 = scmp.lt.s32.totalorder %s66, 0
    %s68 = scalar_select %p67, %s66, 0
    %s69 = smul.u32 4, %s68
    %s70 = ssub.s32 2, %s69
    %s71 = smul.u32 128, %s70
    %s72 = sadd.s32 0, 0
    %p73 = scmp.lt.s32.totalorder %s72, 0
    %s74 = scalar_select %p73, %s72, 0
    %s75 = smul.u32 4, %s74
    %s76 = ssub.s32 2, %s75
    %s77 = smul.u32 128, %s76
    %p78 = scmp.eq.s32.totalorder 0, 0
    // Predicated region
    $region18: #{tpu_custom_call.1} parent=1 // pred_check
      %p79 = pneg %p78
    $region19: #{tpu_custom_call.1} parent=1 // pred_check_branch
      %81 = sbr.rel (%p79) target = $region21
    $region20: #{tpu_custom_call.1} parent=1 // pred_region
      %82 = vst [vmem:[#allocation7] sm:$0xff] 0.0
      %83 = vst [vmem:[#allocation8] sm:$0xff] 0.0
      %84 = vst [vmem:[#allocation10] sm:$0xff] 0.0
      %85 = vst [vmem:[#allocation11] sm:$0xff] 0.0
    $region21: #{tpu_custom_call.1} parent=1 // pred_fallthru
      _
    %s86 = sadd.s32 0, 0
    %s87 = smul.u32 %s86, 32
    %s88 = sadd.s32 %s87, 32
    %p89 = scmp.le.s32.totalorder %s88, 16
    // Predicated region
    $region22: #{tpu_custom_call.1} parent=1 // pred_check
      %p90 = pneg %p89
    $region23: #{tpu_custom_call.1} parent=1 // pred_check_branch
      %92 = sbr.rel (%p90) target = $region25
    $region24: #{tpu_custom_call.1} parent=1 // pred_region
      %v93 = vld [vmem:[#allocation2] sm:$0xff]
      %v94 = vld [vmem:[#allocation2 + $0x8] sm:$0xff]
      %v95 = vld [vmem:[#allocation2 + $0x10] sm:$0xff]
      %v96 = vld [vmem:[#allocation2 + $0x18] sm:$0xff]
      %v97 = vld [vmem:[#allocation5] sm:$0xff]
      %v98 = vld [vmem:[#allocation5 + $0x8] sm:$0xff]
      %v99 = vld [vmem:[#allocation5 + $0x10] sm:$0xff]
      %v100 = vld [vmem:[#allocation5 + $0x18] sm:$0xff]
      %vm101 = vcmp.eq.f32.partialorder %v97, 1.0
      %vm102 = vcmp.eq.f32.partialorder %v98, 1.0
      %vm103 = vcmp.eq.f32.partialorder %v99, 1.0
      %vm104 = vcmp.eq.f32.partialorder %v100, 1.0
      %vm105 = vcmp.eq.f32.partialorder %v97, 0.0
      %vm106 = vcmp.eq.f32.partialorder %v98, 0.0
      %vm107 = vcmp.eq.f32.partialorder %v99, 0.0
      %vm108 = vcmp.eq.f32.partialorder %v100, 0.0
      %v109 = vsub.f32 1.0, %v93
      %v110 = vsub.f32 1.0, %v94
      %v111 = vsub.f32 1.0, %v95
      %v112 = vsub.f32 1.0, %v96
      %v113 = vsel %vm101, %v93, %v109
      %v114 = vsel %vm102, %v94, %v110
      %v115 = vsel %vm103, %v95, %v111
      %v116 = vsel %vm104, %v96, %v112
      %v117 = vlog2.pop %v113
      %v118 = vmul.f32 %v117, 0.6931472
      %v119 = vlog2.pop %v114
      %v120 = vmul.f32 %v119, 0.6931472
      %v121 = vlog2.pop %v115
      %v122 = vmul.f32 %v121, 0.6931472
      %v123 = vlog2.pop %v116
      %v124 = vmul.f32 %v123, 0.6931472
      %v125 = vld [vmem:[#allocation7] sm:$0xff]
      %v126 = vsel %vm101, %v118, 0.0
      %v127 = vsel %vm102, %v120, 0.0
      %v128 = vsel %vm103, %v122, 0.0
      %v129 = vsel %vm104, %v124, 0.0
      %v130 = vadd.f32 %v126, %v127
      %v131 = vadd.f32 %v130, %v128
      %v132 = vadd.f32 %v131, %v129
      %v133 = vadd.f32 %v125, %v132
      %134 = vst [vmem:[#allocation7] sm:$0xff] %v133
      %v135 = vld [vmem:[#allocation8] sm:$0xff]
      %v136 = vsel %vm105, %v118, 0.0
      %v137 = vsel %vm106, %v120, 0.0
      %v138 = vsel %vm107, %v122, 0.0
      %v139 = vsel %vm108, %v124, 0.0
      %v140 = vadd.f32 %v136, %v137
      %v141 = vadd.f32 %v140, %v138
      %v142 = vadd.f32 %v141, %v139
      %v143 = vadd.f32 %v135, %v142
      %144 = vst [vmem:[#allocation8] sm:$0xff] %v143
      %v145 = vld [vmem:[#allocation10] sm:$0xff]
      %v146 = vsel %vm101, 1, 0
      %v147 = vsel %vm102, 1, 0
      %v148 = vsel %vm103, 1, 0
      %v149 = vsel %vm104, 1, 0
      %v150 = vcvt.s32.f32 %v146
      %v151 = vcvt.s32.f32 %v147
      %v152 = vcvt.s32.f32 %v148
      %v153 = vcvt.s32.f32 %v149
      %v154 = vadd.f32 %v150, %v151
      %v155 = vadd.f32 %v154, %v152
      %v156 = vadd.f32 %v155, %v153
      %v157 = vadd.f32 %v145, %v156
      %158 = vst [vmem:[#allocation10] sm:$0xff] %v157
      %v159 = vld [vmem:[#allocation11] sm:$0xff]
      %v160 = vsel %vm105, 1, 0
      %v161 = vsel %vm106, 1, 0
      %v162 = vsel %vm107, 1, 0
      %v163 = vsel %vm108, 1, 0
      %v164 = vcvt.s32.f32 %v160
      %v165 = vcvt.s32.f32 %v161
      %v166 = vcvt.s32.f32 %v162
      %v167 = vcvt.s32.f32 %v163
      %v168 = vadd.f32 %v164, %v165
      %v169 = vadd.f32 %v168, %v166
      %v170 = vadd.f32 %v169, %v167
      %v171 = vadd.f32 %v159, %v170
      %172 = vst [vmem:[#allocation11] sm:$0xff] %v171
    $region25: #{tpu_custom_call.1} parent=1 // pred_fallthru
      _
    %p173 = scmp.lt.s32.totalorder %s87, 16
    %p174 = scmp.gt.s32.totalorder %s88, 16
    %p175 = pnand %p173, %p174
    %p176 = pneg %p175
    // Predicated region
    $region26: #{tpu_custom_call.1} parent=1 // pred_check
      _
    $region27: #{tpu_custom_call.1} parent=1 // pred_check_branch
      %178 = sbr.rel (%p175) target = $region29
    $region28: #{tpu_custom_call.1} parent=1 // pred_region
      %v179 = vld [vmem:[#allocation2] sm:$0xff]
      %v180 = vld [vmem:[#allocation2 + $0x8] sm:$0xff]
      %v181 = vld [vmem:[#allocation2 + $0x10] sm:$0xff]
      %v182 = vld [vmem:[#allocation2 + $0x18] sm:$0xff]
      %v183 = vld [vmem:[#allocation5] sm:$0xff]
      %v184 = vld [vmem:[#allocation5 + $0x8] sm:$0xff]
      %v185 = vld [vmem:[#allocation5 + $0x10] sm:$0xff]
      %v186 = vld [vmem:[#allocation5 + $0x18] sm:$0xff]
      %vm187 = vcmp.eq.f32.partialorder %v183, 1.0
      %vm188 = vcmp.eq.f32.partialorder %v184, 1.0
      %vm189 = vcmp.eq.f32.partialorder %v185, 1.0
      %vm190 = vcmp.eq.f32.partialorder %v186, 1.0
      %vm191 = vcmp.eq.f32.partialorder %v183, 0.0
      %vm192 = vcmp.eq.f32.partialorder %v184, 0.0
      %vm193 = vcmp.eq.f32.partialorder %v185, 0.0
      %vm194 = vcmp.eq.f32.partialorder %v186, 0.0
      %v195 = vsub.f32 1.0, %v179
      %v196 = vsub.f32 1.0, %v180
      %v197 = vsub.f32 1.0, %v181
      %v198 = vsub.f32 1.0, %v182
      %v199 = vsel %vm187, %v179, %v195
      %v200 = vsel %vm188, %v180, %v196
      %v201 = vsel %vm189, %v181, %v197
      %v202 = vsel %vm190, %v182, %v198
      %v203 = vlog2.pop %v199
      %v204 = vmul.f32 %v203, 0.6931472
      %v205 = vlog2.pop %v200
      %v206 = vmul.f32 %v205, 0.6931472
      %v207 = vlog2.pop %v201
      %v208 = vmul.f32 %v207, 0.6931472
      %v209 = vlog2.pop %v202
      %v210 = vmul.f32 %v209, 0.6931472
      %v211 = vlaneseq
      %v212 = vshrl.u32 %v211, 7
      %v213 = vadd.s32 %v212, 8
      %v214 = vadd.s32 %v212, 16
      %v215 = vadd.s32 %v212, 24
      %v216 = vstv %s87
      %v217 = vadd.s32 %v216, %v212
      %v218 = vadd.s32 %v216, %v213
      %v219 = vadd.s32 %v216, %v214
      %v220 = vadd.s32 %v216, %v215
      %vm221 = vcmp.lt.s32.totalorder %v217, 16
      %vm222 = vcmp.lt.s32.totalorder %v218, 16
      %vm223 = vcmp.lt.s32.totalorder %v219, 16
      %vm224 = vcmp.lt.s32.totalorder %v220, 16
      %vm225 = vmand %vm187, %vm221
      %vm226 = vmand %vm188, %vm222
      %vm227 = vmand %vm189, %vm223
      %vm228 = vmand %vm190, %vm224
      %vm229 = vmand %vm191, %vm221
      %vm230 = vmand %vm192, %vm222
      %vm231 = vmand %vm193, %vm223
      %vm232 = vmand %vm194, %vm224
      %v233 = vld [vmem:[#allocation7] sm:$0xff]
      %v234 = vsel %vm225, %v204, 0.0
      %v235 = vsel %vm226, %v206, 0.0
      %v236 = vsel %vm227, %v208, 0.0
      %v237 = vsel %vm228, %v210, 0.0
      %v238 = vadd.f32 %v234, %v235
      %v239 = vadd.f32 %v238, %v236
      %v240 = vadd.f32 %v239, %v237
      %v241 = vadd.f32 %v233, %v240
      %242 = vst [vmem:[#allocation7] sm:$0xff] %v241
      %v243 = vld [vmem:[#allocation8] sm:$0xff]
      %v244 = vsel %vm229, %v204, 0.0
      %v245 = vsel %vm230, %v206, 0.0
      %v246 = vsel %vm231, %v208, 0.0
      %v247 = vsel %vm232, %v210, 0.0
      %v248 = vadd.f32 %v244, %v245
      %v249 = vadd.f32 %v248, %v246
      %v250 = vadd.f32 %v249, %v247
      %v251 = vadd.f32 %v243, %v250
      %252 = vst [vmem:[#allocation8] sm:$0xff] %v251
      %v253 = vld [vmem:[#allocation10] sm:$0xff]
      %v254 = vsel %vm225, 1, 0
      %v255 = vsel %vm226, 1, 0
      %v256 = vsel %vm227, 1, 0
      %v257 = vsel %vm228, 1, 0
      %v258 = vcvt.s32.f32 %v254
      %v259 = vcvt.s32.f32 %v255
      %v260 = vcvt.s32.f32 %v256
      %v261 = vcvt.s32.f32 %v257
      %v262 = vadd.f32 %v258, %v259
      %v263 = vadd.f32 %v262, %v260
      %v264 = vadd.f32 %v263, %v261
      %v265 = vadd.f32 %v253, %v264
      %266 = vst [vmem:[#allocation10] sm:$0xff] %v265
      %v267 = vld [vmem:[#allocation11] sm:$0xff]
      %v268 = vsel %vm229, 1, 0
      %v269 = vsel %vm230, 1, 0
      %v270 = vsel %vm231, 1, 0
      %v271 = vsel %vm232, 1, 0
      %v272 = vcvt.s32.f32 %v268
      %v273 = vcvt.s32.f32 %v269
      %v274 = vcvt.s32.f32 %v270
      %v275 = vcvt.s32.f32 %v271
      %v276 = vadd.f32 %v272, %v273
      %v277 = vadd.f32 %v276, %v274
      %v278 = vadd.f32 %v277, %v275
      %v279 = vadd.f32 %v267, %v278
      %280 = vst [vmem:[#allocation11] sm:$0xff] %v279
    $region29: #{tpu_custom_call.1} parent=1 // pred_fallthru
      _
    // Predicated region
    $region30: #{tpu_custom_call.1} parent=1 // pred_check
      _
    $region31: #{tpu_custom_call.1} parent=1 // pred_check_branch
      %282 = sbr.rel (0) target = $region33
    $region32: #{tpu_custom_call.1} parent=1 // pred_region
      %s284 = ssub.s32 128, 128
      %285 = vsyncadd [#allocation4], %s284
      %s287 = sshll.u32 [#allocation7], 4
      %s288 = int_to_ptr.vmem [resolvable:$true] %s287
      %290 = dma.vmem_to_hbm [thread:$0]  %s288, 128, %s2, [#allocation4]
    $region33: #{tpu_custom_call.1} parent=1 // pred_fallthru
      _
    // Predicated region
    $region34: #{tpu_custom_call.1} parent=1 // pred_check
      _
    $region35: #{tpu_custom_call.1} parent=1 // pred_check_branch
      %292 = sbr.rel (0) target = $region37
    $region36: #{tpu_custom_call.1} parent=1 // pred_region
      %s294 = ssub.s32 128, 128
      %295 = vsyncadd [#allocation9], %s294
      %s297 = sshll.u32 [#allocation8], 4
      %s298 = int_to_ptr.vmem [resolvable:$true] %s297
      %300 = dma.vmem_to_hbm [thread:$0]  %s298, 128, %s3, [#allocation9]
    $region37: #{tpu_custom_call.1} parent=1 // pred_fallthru
      _
    // Predicated region
    $region38: #{tpu_custom_call.1} parent=1 // pred_check
      _
    $region39: #{tpu_custom_call.1} parent=1 // pred_check_branch
      %302 = sbr.rel (0) target = $region41
    $region40: #{tpu_custom_call.1} parent=1 // pred_region
      %s304 = ssub.s32 128, 128
      %305 = vsyncadd [#allocation9], %s304
      %s307 = sshll.u32 [#allocation10], 4
      %s308 = int_to_ptr.vmem [resolvable:$true] %s307
      %310 = dma.vmem_to_hbm [thread:$0]  %s308, 128, %s4, [#allocation9]
    $region41: #{tpu_custom_call.1} parent=1 // pred_fallthru
      _
    // Predicated region
    $region42: #{tpu_custom_call.1} parent=1 // pred_check
      _
    $region43: #{tpu_custom_call.1} parent=1 // pred_check_branch
      %312 = sbr.rel (0) target = $region45
    $region44: #{tpu_custom_call.1} parent=1 // pred_region
      %s314 = ssub.s32 128, 128
      %315 = vsyncadd [#allocation12], %s314
      %s317 = sshll.u32 [#allocation11], 4
      %s318 = int_to_ptr.vmem [resolvable:$true] %s317
      %320 = dma.vmem_to_hbm [thread:$0]  %s318, 128, %s5, [#allocation12]
    $region45: #{tpu_custom_call.1} parent=1 // pred_fallthru
      _
    // Predicated region
    $region46: #{tpu_custom_call.1} parent=1 // pred_check
      _
    $region47: #{tpu_custom_call.1} parent=1 // pred_check_branch
      %322 = sbr.rel (0) target = $region49
    $region48: #{tpu_custom_call.1} parent=1 // pred_region
      %323 = dma.done [#allocation4], 128
    $region49: #{tpu_custom_call.1} parent=1 // pred_fallthru
      _
    // Predicated region
    $region50: #{tpu_custom_call.1} parent=1 // pred_check
      _
    $region51: #{tpu_custom_call.1} parent=1 // pred_check_branch
      %325 = sbr.rel (0) target = $region53
    $region52: #{tpu_custom_call.1} parent=1 // pred_region
      %326 = dma.done [#allocation9], 128
    $region53: #{tpu_custom_call.1} parent=1 // pred_fallthru
      _
    // Predicated region
    $region54: #{tpu_custom_call.1} parent=1 // pred_check
      _
    $region55: #{tpu_custom_call.1} parent=1 // pred_check_branch
      %328 = sbr.rel (0) target = $region57
    $region56: #{tpu_custom_call.1} parent=1 // pred_region
      %329 = dma.done [#allocation9], 128
    $region57: #{tpu_custom_call.1} parent=1 // pred_fallthru
      _
    // Predicated region
    $region58: #{tpu_custom_call.1} parent=1 // pred_check
      _
    $region59: #{tpu_custom_call.1} parent=1 // pred_check_branch
      %331 = sbr.rel (0) target = $region61
    $region60: #{tpu_custom_call.1} parent=1 // pred_region
      %332 = dma.done [#allocation12], 128
    $region61: #{tpu_custom_call.1} parent=1 // pred_fallthru
      _
    %333 = vsyncpa [#allocation3], 1
    %334 = vsyncpa [#allocation6], 1
    %335 = vsyncpa [#allocation4], 1
    %336 = vsyncpa [#allocation9], 1
    %337 = vsyncpa [#allocation12], 1

</llo_original>
